<compile_context>
chip_gen: v7x
topology: tpu7x:2x2x1
jax: 0.10.0
libtpu: 0.0.40
codegen_flags: <defaults>
</compile_context>

<pallas_src>
import functools

import jax
import jax.numpy as jnp
from jax.experimental import pallas as pl
from jax.experimental.pallas import tpu as pltpu

_LANE = 128
_SUBLANE = 8
_MAX_BLOCK_ROWS = 2048  # 2048 x 128 x 4B = 1 MiB per f32 input block


def _masked_mse_kernel(pred_ref, target_ref, mask_ref, out_ref, *,
                       block_rows, steps_per_partial, rows, needs_mask):
    j = pl.program_id(1)  # reduction axis (last, "arbitrary")

    @pl.when(j == 0)
    def _():
        out_ref[...] = jnp.zeros_like(out_ref)

    # Cast in-kernel (keeps HBM traffic at native dtype); d = (p - t) * m is
    # one multiply fewer than p*m - t*m.
    p = pred_ref[...].astype(jnp.float32)
    t = target_ref[...].astype(jnp.float32)
    m = mask_ref[...].astype(jnp.float32)
    d = (p - t) * m
    dd = d * d

    if needs_mask:
        # Zero out rows past the true extent (ragged last block / clamped
        # duplicate blocks read unspecified data).
        i = pl.program_id(0)
        lin = i * steps_per_partial + j  # unclamped linear block index
        row_ids = jax.lax.broadcasted_iota(jnp.int32, (block_rows, _LANE), 0)
        valid = (lin * block_rows + row_ids) < rows
        dd = jnp.where(valid, dd, jnp.float32(0.0))

    # Pure VPU partial reduction into the resident (8, 128) output block:
    # (block_rows, 128) -> (block_rows//8, 8, 128) summed over the leading axis
    # is just elementwise vreg adds (no per-step XLU reduce, no scalar chain).
    out_ref[...] += jnp.sum(dd.reshape(-1, _SUBLANE, _LANE), axis=0)


def mask_loss_wrapper_mse(pred: jax.Array, target: jax.Array, mask: jax.Array,
                          *, max_block_rows: int = _MAX_BLOCK_ROWS) -> jax.Array:
    """Masked MSE loss: mean over all elements of ((pred - target) * mask)**2."""
    if pred.shape != target.shape or pred.shape != mask.shape:
        raise ValueError(
            f"Shape mismatch: pred {pred.shape}, target {target.shape}, mask {mask.shape}"
        )

    n_elems = pred.size
    lane_pad = (-n_elems) % _LANE          # only pad if n is not lane-aligned
    rows = (n_elems + lane_pad) // _LANE

    def to_slab(x):
        flat = jnp.ravel(x)                # free for contiguous NCHW
        if lane_pad:
            flat = jnp.pad(flat, (0, lane_pad))  # zeros -> contribute nothing
        return flat.reshape(rows, _LANE)   # native dtype, no wrapper-side cast

    p2, t2, m2 = to_slab(pred), to_slab(target), to_slab(mask)

    # Block sizing: multiple of 8 sublanes, capped for VMEM safety on all gens.
    rows_rounded = -(-rows // _SUBLANE) * _SUBLANE
    blk = min(max_block_rows, rows_rounded)
    total_blocks = -(-rows // blk)

    # Two partial sums -> both TensorCores on v7x; harmless on v5e/v6e.
    n_partials = 2 if total_blocks >= 2 else 1
    spp = -(-total_blocks // n_partials)   # reduction steps per partial

    needs_clamp = (n_partials * spp != total_blocks)
    needs_mask = needs_clamp or (total_blocks * blk != rows)

    if needs_clamp:
        def in_idx(i, j):
            return (jnp.minimum(i * spp + j, total_blocks - 1), 0)
    else:
        def in_idx(i, j):
            return (i * spp + j, 0)

    in_spec = pl.BlockSpec((blk, _LANE), in_idx)
    # Lane-dense output block, resident across the reduction axis (index_map
    # independent of j) -> it doubles as the accumulator.
    out_spec = pl.BlockSpec((None, _SUBLANE, _LANE), lambda i, j: (i, 0, 0))

    kernel = functools.partial(
        _masked_mse_kernel,
        block_rows=blk,
        steps_per_partial=spp,
        rows=rows,
        needs_mask=needs_mask,
    )

    partials = pl.pallas_call(
        kernel,
        out_shape=jax.ShapeDtypeStruct((n_partials, _SUBLANE, _LANE), jnp.float32),
        grid=(n_partials, spp),
        in_specs=[in_spec, in_spec, in_spec],
        out_specs=out_spec,
        compiler_params=pltpu.CompilerParams(
            dimension_semantics=("parallel", "arbitrary"),
        ),
    )(p2, t2, m2)

    # Tiny final reduction (<= 2*8*128 f32) + divide by the true element count.
    return jnp.sum(partials) / jnp.float32(n_elems)


if __name__ == "__main__":
    key = jax.random.PRNGKey(0)
    kp, kt, km = jax.random.split(key, 3)

    B, C, H, W = 2, 4, 16, 16  # NCHW, matching the PyTorch layout
    pred = jax.random.normal(kp, (B, C, H, W), dtype=jnp.float32)
    target = jax.random.normal(kt, (B, C, H, W), dtype=jnp.float32)
    mask = (jax.random.uniform(km, (B, C, H, W)) > 0.5).astype(jnp.float32)

    loss = mask_loss_wrapper_mse(pred, target, mask)
    jax.block_until_ready(loss)

    # Pure-JAX reference (== torch: MSELoss()(pred*mask, target*mask))
    ref = jnp.mean(((pred * mask) - (target * mask)) ** 2)
    assert jnp.allclose(loss, ref, rtol=1e-5, atol=1e-6), (loss, ref)

    print("KERNEL_OK")
</pallas_src>

<mosaic_0001>
module attributes {stable_mosaic.version = 11 : i64} {
  func.func @_masked_mse_kernel(%arg0: i32, %arg1: i32, %arg2: memref<16x128xf32, #tpu.memory_space<vmem>>, %arg3: memref<16x128xf32, #tpu.memory_space<vmem>>, %arg4: memref<16x128xf32, #tpu.memory_space<vmem>>, %arg5: memref<1x8x128xf32, #tpu.memory_space<vmem>>) attributes {dimension_semantics = [#tpu.dimension_semantics<parallel>, #tpu.dimension_semantics<arbitrary>], iteration_bounds = array<i64: 1, 1>, scalar_prefetch = 0 : i64, scratch_operands = 0 : i64, tpu.core_type = #tpu.core_type<tc>, window_params = [{transform_indices = @transform_0, window_bounds = array<i64: 16, 128>}, {transform_indices = @transform_1, window_bounds = array<i64: 16, 128>}, {transform_indices = @transform_2, window_bounds = array<i64: 16, 128>}, {transform_indices = @transform_3, window_bounds = array<i64: 1, 8, 128>}]} {
    %c0_i32 = arith.constant 0 : i32
    %0 = arith.cmpi eq, %arg1, %c0_i32 : i32
    %1 = arith.extui %0 : i1 to i32
    %c0_i32_0 = arith.constant 0 : i32
    %2 = arith.cmpi ne, %1, %c0_i32_0 : i32
    scf.if %2 {
      %cst_12 = arith.constant 0.000000e+00 : f32
      %17 = vector.broadcast %cst_12 : f32 to vector<8x128xf32>
      %c0_13 = arith.constant 0 : index
      %c0_14 = arith.constant 0 : index
      %c0_15 = arith.constant 0 : index
      %18 = vector.load %arg5[%c0_13, %c0_14, %c0_15] : memref<1x8x128xf32, #tpu.memory_space<vmem>>, vector<1x8x128xf32>
      %19 = vector.shape_cast %18 : vector<1x8x128xf32> to vector<8x128xf32>
      %20 = vector.shape_cast %17 : vector<8x128xf32> to vector<1x8x128xf32>
      tpu.vector_store %arg5[%c0_13, %c0_14, %c0_15], %20 {strides = array<i32>} : memref<1x8x128xf32, #tpu.memory_space<vmem>>, vector<1x8x128xf32>,
    } else {
    }
    %c0 = arith.constant 0 : index
    %c0_1 = arith.constant 0 : index
    %3 = vector.load %arg2[%c0, %c0_1] : memref<16x128xf32, #tpu.memory_space<vmem>>, vector<16x128xf32>
    %c0_2 = arith.constant 0 : index
    %c0_3 = arith.constant 0 : index
    %4 = vector.load %arg3[%c0_2, %c0_3] : memref<16x128xf32, #tpu.memory_space<vmem>>, vector<16x128xf32>
    %c0_4 = arith.constant 0 : index
    %c0_5 = arith.constant 0 : index
    %5 = vector.load %arg4[%c0_4, %c0_5] : memref<16x128xf32, #tpu.memory_space<vmem>>, vector<16x128xf32>
    %6 = arith.subf %3, %4 : vector<16x128xf32>
    %7 = arith.mulf %6, %5 : vector<16x128xf32>
    %8 = arith.mulf %7, %7 : vector<16x128xf32>
    %c0_6 = arith.constant 0 : index
    %c0_7 = arith.constant 0 : index
    %c0_8 = arith.constant 0 : index
    %9 = vector.load %arg5[%c0_6, %c0_7, %c0_8] : memref<1x8x128xf32, #tpu.memory_space<vmem>>, vector<1x8x128xf32>
    %10 = vector.shape_cast %9 : vector<1x8x128xf32> to vector<8x128xf32>
    %11 = vector.shape_cast %8 : vector<16x128xf32> to vector<2x8x128xf32>
    %cst = arith.constant dense<0.000000e+00> : vector<8x128xf32>
    %12 = vector.multi_reduction <add>, %11, %cst [0] : vector<2x8x128xf32> to vector<8x128xf32>
    %13 = arith.addf %10, %12 : vector<8x128xf32>
    %c0_9 = arith.constant 0 : index
    %c0_10 = arith.constant 0 : index
    %c0_11 = arith.constant 0 : index
    %14 = vector.load %arg5[%c0_9, %c0_10, %c0_11] : memref<1x8x128xf32, #tpu.memory_space<vmem>>, vector<1x8x128xf32>
    %15 = vector.shape_cast %14 : vector<1x8x128xf32> to vector<8x128xf32>
    %16 = vector.shape_cast %13 : vector<8x128xf32> to vector<1x8x128xf32>
    tpu.vector_store %arg5[%c0_9, %c0_10, %c0_11], %16 {strides = array<i32>} : memref<1x8x128xf32, #tpu.memory_space<vmem>>, vector<1x8x128xf32>,
    return
  }
  func.func @transform_0(%arg0: i32, %arg1: i32) -> (i32, i32) {
    %c1_i32 = arith.constant 1 : i32
    %0 = arith.muli %arg0, %c1_i32 : i32
    %1 = arith.addi %0, %arg1 : i32
    %c0_i32 = arith.constant 0 : i32
    %c0_i32_0 = arith.constant 0 : i32
    return %1, %c0_i32 : i32, i32
  }
  func.func @transform_1(%arg0: i32, %arg1: i32) -> (i32, i32) {
    %c1_i32 = arith.constant 1 : i32
    %0 = arith.muli %arg0, %c1_i32 : i32
    %1 = arith.addi %0, %arg1 : i32
    %c0_i32 = arith.constant 0 : i32
    %c0_i32_0 = arith.constant 0 : i32
    return %1, %c0_i32 : i32, i32
  }
  func.func @transform_2(%arg0: i32, %arg1: i32) -> (i32, i32) {
    %c1_i32 = arith.constant 1 : i32
    %0 = arith.muli %arg0, %c1_i32 : i32
    %1 = arith.addi %0, %arg1 : i32
    %c0_i32 = arith.constant 0 : i32
    %c0_i32_0 = arith.constant 0 : i32
    return %1, %c0_i32 : i32, i32
  }
  func.func @transform_3(%arg0: i32, %arg1: i32) -> (i32, i32, i32) {
    %c0_i32 = arith.constant 0 : i32
    %c0_i32_0 = arith.constant 0 : i32
    %c0_i32_1 = arith.constant 0 : i32
    return %arg0, %c0_i32, %c0_i32_0 : i32, i32, i32
  }
}

</mosaic_0001>

<llo_original>
// kernel: tpu_custom_call.1
$region0: #{tpu_custom_call.1}
  #allocation0 [shape = 'u32[]', space=smem, size = 0x4, offset = 0x4, fixed_abs, tag = 'smem constant byte address 0x4 - core index']
  #allocation1 [shape = 'u32[144,128]{1,0:T(1,128)}', space=vmem, size = 0x12000, scoped, tag = 'internal scratch']
  %s0 = inlined_call_operand.hbm [shape: f32[16,128], index: 0, kind: input, shape index: {}]
  %s1 = inlined_call_operand.hbm [shape: f32[16,128], index: 1, kind: input, shape index: {}]
  %s2 = inlined_call_operand.hbm [shape: f32[16,128], index: 2, kind: input, shape index: {}]
  %s3 = inlined_call_operand.hbm [shape: f32[1,8,128], index: 3, kind: output, shape index: {}]
  %s4 = sld [smem:[#allocation0]]
  $region38: #{tpu_custom_call.1} parent=0
    _
  %s6 = ssub.s32 1, %s4
  %s7 = scalar_select 0, %s6, %s4
  $region1: #{tpu_custom_call.1} parent=0
    #allocation2 [shape = 'u8[8192]{0}', space=vmem, size = 0x2000, scoped, tag = 'input window, operand 0, single buffered']
    #allocation3 [shape = 's32[1]{0}', space=sflag, size = 0x4, scoped, tag = 'scoped memory for tpu_custom_call.1']
    #allocation4 [shape = 's32[1]{0}', space=sflag, size = 0x4, scoped, tag = 'scoped memory for tpu_custom_call.1']
    #allocation5 [shape = 'u8[8192]{0}', space=vmem, size = 0x2000, scoped, tag = 'input window, operand 1, single buffered']
    #allocation6 [shape = 's32[1]{0}', space=sflag, size = 0x4, scoped, tag = 'scoped memory for tpu_custom_call.1']
    #allocation7 [shape = 'u8[8192]{0}', space=vmem, size = 0x2000, scoped, tag = 'input window, operand 2, single buffered']
    #allocation8 [shape = 'u8[4096]{0}', space=vmem, size = 0x1000, scoped, tag = 'output window, operand 0, single buffered']
    %8 = vsyncpa [#allocation3], 0
    %9 = vsyncpa [#allocation6], 0
    %10 = vsyncpa [#allocation4], 0
    // Predicated region
    $region2: #{tpu_custom_call.1} parent=1 // pred_check
      _
    $region3: #{tpu_custom_call.1} parent=1 // pred_check_branch
      %12 = sbr.rel (0) target = $region5
    $region4: #{tpu_custom_call.1} parent=1 // pred_region
      %s13 = sadd.s32 0, 0
      %s14 = smul.u32 2, %s13
      %s16 = ssub.s32 256, 256
      %17 = vsyncadd [#allocation3], %s16
      %s18 = smul.addr %s14, 128
      %s19 = scalar_lea.hbm %s0, %s18
      %s20 = sshll.u32 [#allocation2], 4
      %s21 = int_to_ptr.vmem [resolvable:$true] %s20
      %26 = dma.hbm_to_vmem [thread:$0]  %s19, 256, %s21, [#allocation3], 128, 128, 8
    $region5: #{tpu_custom_call.1} parent=1 // pred_fallthru
      _
    // Predicated region
    $region6: #{tpu_custom_call.1} parent=1 // pred_check
      _
    $region7: #{tpu_custom_call.1} parent=1 // pred_check_branch
      %28 = sbr.rel (0) target = $region9
    $region8: #{tpu_custom_call.1} parent=1 // pred_region
      %s29 = sadd.s32 0, 0
      %s30 = smul.u32 2, %s29
      %s32 = ssub.s32 256, 256
      %33 = vsyncadd [#allocation6], %s32
      %s34 = smul.addr %s30, 128
      %s35 = scalar_lea.hbm %s1, %s34
      %s36 = sshll.u32 [#allocation5], 4
      %s37 = int_to_ptr.vmem [resolvable:$true] %s36
      %42 = dma.hbm_to_vmem [thread:$0]  %s35, 256, %s37, [#allocation6], 128, 128, 8
    $region9: #{tpu_custom_call.1} parent=1 // pred_fallthru
      _
    // Predicated region
    $region10: #{tpu_custom_call.1} parent=1 // pred_check
      _
    $region11: #{tpu_custom_call.1} parent=1 // pred_check_branch
      %44 = sbr.rel (0) target = $region13
    $region12: #{tpu_custom_call.1} parent=1 // pred_region
      %s45 = sadd.s32 0, 0
      %s46 = smul.u32 2, %s45
      %s48 = ssub.s32 256, 256
      %49 = vsyncadd [#allocation6], %s48
      %s50 = smul.addr %s46, 128
      %s51 = scalar_lea.hbm %s2, %s50
      %s52 = sshll.u32 [#allocation7], 4
      %s53 = int_to_ptr.vmem [resolvable:$true] %s52
      %58 = dma.hbm_to_vmem [thread:$0]  %s51, 256, %s53, [#allocation6], 128, 128, 8
    $region13: #{tpu_custom_call.1} parent=1 // pred_fallthru
      _
    // Predicated region
    $region14: #{tpu_custom_call.1} parent=1 // pred_check
      _
    $region15: #{tpu_custom_call.1} parent=1 // pred_check_branch
      %60 = sbr.rel (0) target = $region17
    $region16: #{tpu_custom_call.1} parent=1 // pred_region
      %61 = dma.done [#allocation3], 256
    $region17: #{tpu_custom_call.1} parent=1 // pred_fallthru
      _
    // Predicated region
    $region18: #{tpu_custom_call.1} parent=1 // pred_check
      _
    $region19: #{tpu_custom_call.1} parent=1 // pred_check_branch
      %63 = sbr.rel (0) target = $region21
    $region20: #{tpu_custom_call.1} parent=1 // pred_region
      %64 = dma.done [#allocation6], 256
    $region21: #{tpu_custom_call.1} parent=1 // pred_fallthru
      _
    // Predicated region
    $region22: #{tpu_custom_call.1} parent=1 // pred_check
      _
    $region23: #{tpu_custom_call.1} parent=1 // pred_check_branch
      %66 = sbr.rel (0) target = $region25
    $region24: #{tpu_custom_call.1} parent=1 // pred_region
      %67 = dma.done [#allocation6], 256
    $region25: #{tpu_custom_call.1} parent=1 // pred_fallthru
      _
    %s68 = sadd.s32 0, 0
    %s69 = smul.u32 2, %s68
    %s70 = sadd.s32 0, 0
    %s71 = smul.u32 2, %s70
    %s72 = sadd.s32 0, 0
    %s73 = smul.u32 2, %s72
    %p74 = scmp.eq.s32.totalorder 0, 0
    // Predicated region
    $region26: #{tpu_custom_call.1} parent=1 // pred_check
      %p75 = pneg %p74
    $region27: #{tpu_custom_call.1} parent=1 // pred_check_branch
      %77 = sbr.rel (%p75) target = $region29
    $region28: #{tpu_custom_call.1} parent=1 // pred_region
      %78 = vst [vmem:[#allocation8] sm:$0xff] 0.0
    $region29: #{tpu_custom_call.1} parent=1 // pred_fallthru
      _
    %v79 = vld [vmem:[#allocation2] sm:$0xff]
    %v80 = vld [vmem:[#allocation2 + $0x8] sm:$0xff]
    %v81 = vld [vmem:[#allocation5] sm:$0xff]
    %v82 = vld [vmem:[#allocation5 + $0x8] sm:$0xff]
    %v83 = vld [vmem:[#allocation7] sm:$0xff]
    %v84 = vld [vmem:[#allocation7 + $0x8] sm:$0xff]
    %v85 = vsub.f32 %v79, %v81
    %v86 = vsub.f32 %v80, %v82
    %v87 = vmul.f32 %v85, %v83
    %v88 = vmul.f32 %v86, %v84
    %v89 = vmul.f32 %v87, %v87
    %v90 = vmul.f32 %v88, %v88
    %v91 = vld [vmem:[#allocation8] sm:$0xff]
    %v92 = vadd.f32 %v89, %v90
    %v93 = vadd.f32 %v91, %v92
    %94 = vst [vmem:[#allocation8] sm:$0xff] %v93
    // Predicated region
    $region30: #{tpu_custom_call.1} parent=1 // pred_check
      _
    $region31: #{tpu_custom_call.1} parent=1 // pred_check_branch
      %96 = sbr.rel (0) target = $region33
    $region32: #{tpu_custom_call.1} parent=1 // pred_region
      %s98 = ssub.s32 128, 128
      %99 = vsyncadd [#allocation4], %s98
      %s101 = sshll.u32 [#allocation8], 4
      %s102 = int_to_ptr.vmem [resolvable:$true] %s101
      %104 = dma.vmem_to_hbm [thread:$0]  %s102, 128, %s3, [#allocation4]
    $region33: #{tpu_custom_call.1} parent=1 // pred_fallthru
      _
    // Predicated region
    $region34: #{tpu_custom_call.1} parent=1 // pred_check
      _
    $region35: #{tpu_custom_call.1} parent=1 // pred_check_branch
      %106 = sbr.rel (0) target = $region37
    $region36: #{tpu_custom_call.1} parent=1 // pred_region
      %107 = dma.done [#allocation4], 128
    $region37: #{tpu_custom_call.1} parent=1 // pred_fallthru
      _
    %108 = vsyncpa [#allocation3], 1
    %109 = vsyncpa [#allocation6], 1
    %110 = vsyncpa [#allocation4], 1

</llo_original>
